<compile_context>
chip_gen: v5e
topology: v5e:2x2
jax: 0.10.0
libtpu: 0.0.40
codegen_flags: <defaults>
</compile_context>

<pallas_src>
import jax
import jax.numpy as jnp
from jax.experimental import pallas as pl
from jax.experimental.pallas import tpu as pltpu

HIDDEN = 32
NROWS = 8          # output sublane rows: u, v, p, T, 4 zero pads
TILE_N_MAX = 2048  # large tiles amortize per-grid-step overhead


def _round_up(v, m):
    return (v + m - 1) // m * m


def _model_fields_kernel(coords_ref, w1t_ref, b1_ref, w2t_ref, b2_ref,
                         fields_ref):
    # coords_ref: (2, TILE_N); row 0 = x, row 1 = y (points on the lane axis).
    xr = coords_ref[0:1, :]                       # (1, TILE_N)
    yr = coords_ref[1:2, :]                       # (1, TILE_N)
    w1x = w1t_ref[:, 0:1]                         # (H, 1)
    w1y = w1t_ref[:, 1:2]                         # (H, 1)

    # K = 2 contraction as VPU FMAs (an MXU matmul here is ~all padding).
    z1 = w1x * xr + w1y * yr + b1_ref[...]        # (H, TILE_N)
    h = jnp.tanh(z1)                              # EUP

    # Single fused MXU matmul producing the lane-dense output slab directly:
    # rows 0..3 = u, v, p, T; rows 4..7 stay 0 (W2t/b2 zero-padded to 8 rows).
    fields_ref[...] = (
        jnp.dot(w2t_ref[...], h, preferred_element_type=jnp.float32)
        + b2_ref[...])                            # (8, TILE_N)


def _run_kernel(coords_t, w1t, b1c, w2t_pad, b2c_pad, tile_n):
    n_pad = coords_t.shape[1]
    grid = (n_pad // tile_n,)
    return pl.pallas_call(
        _model_fields_kernel,
        out_shape=jax.ShapeDtypeStruct((NROWS, n_pad), jnp.float32),
        grid_spec=pltpu.PrefetchScalarGridSpec(
            num_scalar_prefetch=0,
            grid=grid,
            in_specs=[
                pl.BlockSpec((2, tile_n), lambda i: (0, i)),
                pl.BlockSpec((HIDDEN, 2), lambda i: (0, 0)),
                pl.BlockSpec((HIDDEN, 1), lambda i: (0, 0)),
                pl.BlockSpec((NROWS, HIDDEN), lambda i: (0, 0)),
                pl.BlockSpec((NROWS, 1), lambda i: (0, 0)),
            ],
            out_specs=pl.BlockSpec((NROWS, tile_n), lambda i: (0, i)),
        ),
        compiler_params=pltpu.CompilerParams(
            dimension_semantics=("parallel",)),
    )(coords_t, w1t, b1c, w2t_pad, b2c_pad)


def physics_loss_paper(x, params, alpha=0.143e-6, beta=1e-3, nu=1e-6):
    """Forward pass of physicsLossPaper.  x: (B, NX, NY, 2) float32."""
    B, NX, NY, _ = x.shape
    W1, b1, W2, b2 = params

    y = x[:, :, :, 1:2]                                # (B, NX, NY, 1)
    xsliced = x[:, :, :, 0:1]                          # (B, NX, NY, 1)

    # Lane-dense coordinate slab: (2, N), points on the lane axis.
    N = B * NX * NY
    coords_t = jnp.stack(
        [xsliced.reshape(-1), y.reshape(-1)], axis=0).astype(jnp.float32)

    n_pad = _round_up(N, 128)
    tile_n = min(TILE_N_MAX, n_pad)
    n_pad = _round_up(n_pad, tile_n)
    coords_t = jnp.pad(coords_t, ((0, 0), (0, n_pad - N)))

    w1t = W1.T.astype(jnp.float32)                     # (H, 2)
    b1c = b1.reshape(HIDDEN, 1).astype(jnp.float32)    # (H, 1)
    w2t_pad = jnp.zeros((NROWS, HIDDEN), jnp.float32).at[0:4, :].set(
        W2.T.astype(jnp.float32))
    b2c_pad = jnp.zeros((NROWS, 1), jnp.float32).at[0:4, 0].set(
        b2.astype(jnp.float32))

    fields = _run_kernel(coords_t, w1t, b1c, w2t_pad, b2c_pad, tile_n)

    u = fields[0, :N].reshape(B, NX, NY, 1)
    v = fields[1, :N].reshape(B, NX, NY, 1)
    p = fields[2, :N].reshape(B, NX, NY, 1)
    T = fields[3, :N].reshape(B, NX, NY, 1)

    # ---- finite-difference residuals on the interior (as in the reference) ----
    nx, ny = NX, NY
    dx = 10.0 / nx
    dy = 1.0 / ny

    def d_x(f):
        return (f[:, 2:, 1:-1, :] - f[:, :-2, 1:-1, :]) / (2.0 * dx)

    def d_y(f):
        return (f[:, 1:-1, 2:, :] - f[:, 1:-1, :-2, :]) / (2.0 * dy)

    def d_xx(f):
        return (f[:, 2:, 1:-1, :] - 2.0 * f[:, 1:-1, 1:-1, :]
                + f[:, :-2, 1:-1, :]) / dx ** 2

    def d_yy(f):
        return (f[:, 1:-1, 2:, :] - 2.0 * f[:, 1:-1, 1:-1, :]
                + f[:, 1:-1, :-2, :]) / dy ** 2

    u_x_i, u_y_i, u_xx_i, u_yy_i = d_x(u), d_y(u), d_xx(u), d_yy(u)
    v_x_i, v_y_i, v_xx_i, v_yy_i = d_x(v), d_y(v), d_xx(v), d_yy(v)
    T_x_i, T_y_i, T_xx_i, T_yy_i = d_x(T), d_y(T), d_xx(T), d_yy(T)
    p_x_i, p_y_i = d_x(p), d_y(p)
    u_i = u[:, 1:-1, 1:-1, :]
    v_i = v[:, 1:-1, 1:-1, :]

    mse = lambda a, b: jnp.mean((a - b) ** 2)

    L_cont = mse(u_x_i + v_y_i, 0.0)
    L_mom_u = mse(u_i * u_x_i + v_i * u_y_i + beta * p_x_i
                  - nu * (u_xx_i + u_yy_i), 0.0)
    L_mom_v = mse(u_i * v_x_i + v_i * v_y_i + beta * p_y_i
                  - nu * (v_xx_i + v_yy_i), 0.0)
    L_heat = mse(u_i * T_x_i + v_i * T_y_i
                 - alpha * (T_xx_i + T_yy_i), 0.0)

    # ---- boundary conditions ----
    u_avg = 1e-3
    T_wall = 350.0
    T_center = 293.0
    u_inlet_expected = u_avg * 1.5 * (1.0 - 4.0 * y[:, 0, :, :] ** 2)
    T_inlet_expected = T_wall + (T_center - T_wall) * (1.0 - 4.0 * y[:, 0, :, :] ** 2)

    left_T_bc = mse(T[:, 0, :, :], T_inlet_expected)
    top_T_bc = mse(T[:, :, 0, :], T_wall)
    bottom_T_bc = mse(T[:, :, -1, :], T_wall)
    left_u_bc = mse(u[:, 0, :, :], u_inlet_expected)
    # TODO(synk): u_x / v_x / p_y are undefined in the reference forward (only the
    # *_internal FD fields exist and its zero targets don't even broadcast); using
    # the interior FD fields against zero targets of matching shape.
    right_u_bc = mse(u_x_i[:, -1, :, :], 0.0)
    top_u_bc = mse(u[:, :, 0, :], 0.0)
    bottom_u_bc = mse(u[:, :, -1, :], 0.0)
    left_v_bc = mse(v[:, 0, :, :], 0.0)
    right_v_bc = mse(v_x_i[:, -1, :, :], 0.0)
    top_v_bc = mse(v[:, :, 0, :], 0.0)
    bottom_v_bc = mse(v[:, :, -1, :], 0.0)
    right_p_bc = mse(p[:, -1, :, :], 0.0)
    top_p_bc = mse(p_y_i[:, 0, :, :], 0.0)
    bottom_p_bc = mse(p_y_i[:, -1, :, :], 0.0)

    bc_sum = (left_T_bc + top_T_bc + bottom_T_bc + left_u_bc + top_u_bc
              + bottom_u_bc + right_u_bc + right_v_bc + left_v_bc + top_v_bc
              + bottom_v_bc + right_p_bc + top_p_bc + bottom_p_bc)
    bc_loss = jnp.abs(bc_sum)             # torch.norm of a 0-d tensor == abs

    L = jnp.abs(L_mom_u + L_mom_v + L_cont + L_heat + bc_loss)
    return L


def init_params(key):
    k1, k2, k3, k4 = jax.random.split(key, 4)
    W1 = 0.5 * jax.random.normal(k1, (2, HIDDEN), dtype=jnp.float32)
    b1 = 0.1 * jax.random.normal(k2, (HIDDEN,), dtype=jnp.float32)
    W2 = 0.5 * jax.random.normal(k3, (HIDDEN, 4), dtype=jnp.float32)
    b2 = 0.1 * jax.random.normal(k4, (4,), dtype=jnp.float32)
    return W1, b1, W2, b2


if __name__ == "__main__":
    key = jax.random.PRNGKey(0)
    k_x, k_p = jax.random.split(key)
    # x: (B, NX, NY, 2); last dim holds the (x, y) coordinates the loss slices out.
    B, NX, NY = 2, 16, 16
    x = jax.random.normal(k_x, (B, NX, NY, 2), dtype=jnp.float32)
    params = init_params(k_p)

    loss = jax.jit(physics_loss_paper)(x, params)
    loss = jax.block_until_ready(loss)
    assert loss.shape == () and bool(jnp.isfinite(loss))
    print("KERNEL_OK")
</pallas_src>

<mosaic_0001>
module attributes {stable_mosaic.version = 11 : i64} {
  func.func @_model_fields_kernel(%arg0: i32, %arg1: memref<2x512xf32, #tpu.memory_space<vmem>>, %arg2: memref<32x2xf32, #tpu.memory_space<vmem>>, %arg3: memref<32x1xf32, #tpu.memory_space<vmem>>, %arg4: memref<8x32xf32, #tpu.memory_space<vmem>>, %arg5: memref<8x1xf32, #tpu.memory_space<vmem>>, %arg6: memref<8x512xf32, #tpu.memory_space<vmem>>) attributes {dimension_semantics = [#tpu.dimension_semantics<parallel>], iteration_bounds = array<i64: 1>, scalar_prefetch = 0 : i64, scratch_operands = 0 : i64, tpu.core_type = #tpu.core_type<tc>, window_params = [{transform_indices = @transform_0, window_bounds = array<i64: 2, 512>}, {pipeline_mode = #tpu.pipeline_mode<synchronous>, transform_indices = @transform_1, window_bounds = array<i64: 32, 2>}, {pipeline_mode = #tpu.pipeline_mode<synchronous>, transform_indices = @transform_2, window_bounds = array<i64: 32, 1>}, {pipeline_mode = #tpu.pipeline_mode<synchronous>, transform_indices = @transform_3, window_bounds = array<i64: 8, 32>}, {pipeline_mode = #tpu.pipeline_mode<synchronous>, transform_indices = @transform_4, window_bounds = array<i64: 8, 1>}, {transform_indices = @transform_5, window_bounds = array<i64: 8, 512>}]} {
    %c0 = arith.constant 0 : index
    %c0_0 = arith.constant 0 : index
    %0 = vector.load %arg1[%c0, %c0_0] : memref<2x512xf32, #tpu.memory_space<vmem>>, vector<1x512xf32>
    %c1 = arith.constant 1 : index
    %c0_1 = arith.constant 0 : index
    %1 = vector.load %arg1[%c1, %c0_1] : memref<2x512xf32, #tpu.memory_space<vmem>>, vector<1x512xf32>
    %c0_2 = arith.constant 0 : index
    %c0_3 = arith.constant 0 : index
    %2 = vector.load %arg2[%c0_2, %c0_3] : memref<32x2xf32, #tpu.memory_space<vmem>>, vector<32x1xf32>
    %c0_4 = arith.constant 0 : index
    %c1_5 = arith.constant 1 : index
    %3 = vector.load %arg2[%c0_4, %c1_5] : memref<32x2xf32, #tpu.memory_space<vmem>>, vector<32x1xf32>
    %4 = vector.broadcast %2 : vector<32x1xf32> to vector<32x512xf32>
    %5 = vector.broadcast %0 : vector<1x512xf32> to vector<32x512xf32>
    %6 = arith.mulf %4, %5 : vector<32x512xf32>
    %7 = vector.broadcast %3 : vector<32x1xf32> to vector<32x512xf32>
    %8 = vector.broadcast %1 : vector<1x512xf32> to vector<32x512xf32>
    %9 = arith.mulf %7, %8 : vector<32x512xf32>
    %10 = arith.addf %6, %9 : vector<32x512xf32>
    %c0_6 = arith.constant 0 : index
    %c0_7 = arith.constant 0 : index
    %11 = vector.load %arg3[%c0_6, %c0_7] : memref<32x1xf32, #tpu.memory_space<vmem>>, vector<32x1xf32>
    %12 = vector.broadcast %11 : vector<32x1xf32> to vector<32x512xf32>
    %13 = arith.addf %10, %12 : vector<32x512xf32>
    %14 = math.tanh %13 : vector<32x512xf32>
    %c0_8 = arith.constant 0 : index
    %c0_9 = arith.constant 0 : index
    %15 = vector.load %arg4[%c0_8, %c0_9] : memref<8x32xf32, #tpu.memory_space<vmem>>, vector<8x32xf32>
    %cst = arith.constant dense<0.000000e+00> : vector<8x512xf32>
    %16 = tpu.matmul %15, %14, %cst {dimension_numbers = #tpu.dot_dimension_numbers<[1], [0], [0], [1], [0, 0, 1, 1], [], []>} : vector<8x32xf32>, vector<32x512xf32>, vector<8x512xf32> -> vector<8x512xf32>
    %c0_10 = arith.constant 0 : index
    %c0_11 = arith.constant 0 : index
    %17 = vector.load %arg5[%c0_10, %c0_11] : memref<8x1xf32, #tpu.memory_space<vmem>>, vector<8x1xf32>
    %18 = vector.broadcast %17 : vector<8x1xf32> to vector<8x512xf32>
    %19 = arith.addf %16, %18 : vector<8x512xf32>
    %c0_12 = arith.constant 0 : index
    %c0_13 = arith.constant 0 : index
    %20 = vector.load %arg6[%c0_12, %c0_13] : memref<8x512xf32, #tpu.memory_space<vmem>>, vector<8x512xf32>
    tpu.vector_store %arg6[%c0_12, %c0_13], %19 {strides = array<i32>} : memref<8x512xf32, #tpu.memory_space<vmem>>, vector<8x512xf32>,
    return
  }
  func.func @transform_0(%arg0: i32) -> (i32, i32) {
    %c0_i32 = arith.constant 0 : i32
    %c0_i32_0 = arith.constant 0 : i32
    return %c0_i32, %arg0 : i32, i32
  }
  func.func @transform_1(%arg0: i32) -> (i32, i32) {
    %c0_i32 = arith.constant 0 : i32
    %c0_i32_0 = arith.constant 0 : i32
    %c0_i32_1 = arith.constant 0 : i32
    return %c0_i32, %c0_i32_0 : i32, i32
  }
  func.func @transform_2(%arg0: i32) -> (i32, i32) {
    %c0_i32 = arith.constant 0 : i32
    %c0_i32_0 = arith.constant 0 : i32
    %c0_i32_1 = arith.constant 0 : i32
    return %c0_i32, %c0_i32_0 : i32, i32
  }
  func.func @transform_3(%arg0: i32) -> (i32, i32) {
    %c0_i32 = arith.constant 0 : i32
    %c0_i32_0 = arith.constant 0 : i32
    %c0_i32_1 = arith.constant 0 : i32
    return %c0_i32, %c0_i32_0 : i32, i32
  }
  func.func @transform_4(%arg0: i32) -> (i32, i32) {
    %c0_i32 = arith.constant 0 : i32
    %c0_i32_0 = arith.constant 0 : i32
    %c0_i32_1 = arith.constant 0 : i32
    return %c0_i32, %c0_i32_0 : i32, i32
  }
  func.func @transform_5(%arg0: i32) -> (i32, i32) {
    %c0_i32 = arith.constant 0 : i32
    %c0_i32_0 = arith.constant 0 : i32
    return %c0_i32, %arg0 : i32, i32
  }
}

</mosaic_0001>

<llo_original>
// kernel: squeeze.20
$region0: #{squeeze.20}
  %s0 = inlined_call_operand.vmem [shape: f32[512], index: 0, kind: input, shape index: {}]
  %s1 = inlined_call_operand.vmem [shape: f32[2,16,16,1], index: 1, kind: output, shape index: {}]
  $region1: #{squeeze.20} parent=0
    #allocation0 [shape = 'u8[4096]{0}', space=vmem, size = 0x1000, scoped, tag = 'scoped mem for input reshape']
    %s3 = ssub.s32 16, 1
    %v4 = vld [vmem:[%s0] sm:%s3]
    %5 = vst [vmem:[#allocation0] sm:%s3] %v4
    %v6 = vld [vmem:[#allocation0] sm:$0xf]
    %vm7 = vcmask 130048
    %8 = vst.msk [vmem:[%s1] ss:$8 sm:$0xf] %vm7, %v6
    %v9 = vld [vmem:[#allocation0] sm:$0xf]
    %10 = vrot.lane.b32.xlu0 %v9, 112
    %v11 = vpop.permute.xlu0 %10
    %vm12 = vcmask 130048
    %s13 = scalar_lea.vmem %s1, 1
    %14 = vst.msk [vmem:[%s13] ss:$8 sm:$0xf] %vm12, %v11
    %v15 = vld [vmem:[#allocation0] sm:$0xf]
    %16 = vrot.lane.b32.xlu0 %v15, 96
    %v17 = vpop.permute.xlu0 %16
    %vm18 = vcmask 130048
    %s19 = scalar_lea.vmem %s1, 2
    %20 = vst.msk [vmem:[%s19] ss:$8 sm:$0xf] %vm18, %v17
    %v21 = vld [vmem:[#allocation0] sm:$0xf]
    %22 = vrot.lane.b32.xlu0 %v21, 80
    %v23 = vpop.permute.xlu0 %22
    %vm24 = vcmask 130048
    %s25 = scalar_lea.vmem %s1, 3
    %26 = vst.msk [vmem:[%s25] ss:$8 sm:$0xf] %vm24, %v23
    %v27 = vld [vmem:[#allocation0] sm:$0xf]
    %28 = vrot.lane.b32.xlu0 %v27, 64
    %v29 = vpop.permute.xlu0 %28
    %vm30 = vcmask 130048
    %s31 = scalar_lea.vmem %s1, 4
    %32 = vst.msk [vmem:[%s31] ss:$8 sm:$0xf] %vm30, %v29
    %v33 = vld [vmem:[#allocation0] sm:$0xf]
    %34 = vrot.lane.b32.xlu0 %v33, 48
    %v35 = vpop.permute.xlu0 %34
    %vm36 = vcmask 130048
    %s37 = scalar_lea.vmem %s1, 5
    %38 = vst.msk [vmem:[%s37] ss:$8 sm:$0xf] %vm36, %v35
    %v39 = vld [vmem:[#allocation0] sm:$0xf]
    %40 = vrot.lane.b32.xlu0 %v39, 32
    %v41 = vpop.permute.xlu0 %40
    %vm42 = vcmask 130048
    %s43 = scalar_lea.vmem %s1, 6
    %44 = vst.msk [vmem:[%s43] ss:$8 sm:$0xf] %vm42, %v41
    %v45 = vld [vmem:[#allocation0] sm:$0xf]
    %46 = vrot.lane.b32.xlu0 %v45, 16
    %v47 = vpop.permute.xlu0 %46
    %vm48 = vcmask 130048
    %s49 = scalar_lea.vmem %s1, 7
    %50 = vst.msk [vmem:[%s49] ss:$8 sm:$0xf] %vm48, %v47

// kernel: physics_loss_paper.1
$region0: #{physics_loss_paper.1}
  #allocation0 [shape = 'u32[]', space=smem, size = 0x4, offset = 0x4, fixed_abs, tag = 'smem constant byte address 0x4 - core index']
  #allocation1 [shape = 'u32[72,128]{1,0:T(1,128)}', space=vmem, size = 0x9000, scoped, tag = 'internal scratch']
  %s0 = inlined_call_operand.vmem [shape: f32[2,512], index: 0, kind: input, shape index: {}]
  %s1 = inlined_call_operand.vmem [shape: f32[32,2], index: 1, kind: input, shape index: {}]
  %s2 = inlined_call_operand.vmem [shape: f32[32,1], index: 2, kind: input, shape index: {}]
  %s3 = inlined_call_operand.vmem [shape: f32[8,32], index: 3, kind: input, shape index: {}]
  %s4 = inlined_call_operand.vmem [shape: f32[8,1], index: 4, kind: input, shape index: {}]
  %s5 = inlined_call_operand.vmem [shape: f32[8,512], index: 5, kind: output, shape index: {}]
  %s6 = sld [smem:[#allocation0]]
  $region30: #{physics_loss_paper.1} parent=0
    _
  %s8 = ssub.s32 1, %s6
  %s9 = scalar_select 0, %s8, %s6
  // Predicated region
  $region2: #{physics_loss_paper.1} parent=0 // pred_check
    _
  $region3: #{physics_loss_paper.1} parent=0 // pred_check_branch
    %11 = sbr.rel (0) target = $region5
  $region4: #{physics_loss_paper.1} parent=0 // pred_region
    _
  $region5: #{physics_loss_paper.1} parent=0 // pred_fallthru
    _
  // Predicated region
  $region6: #{physics_loss_paper.1} parent=0 // pred_check
    _
  $region7: #{physics_loss_paper.1} parent=0 // pred_check_branch
    %13 = sbr.rel (0) target = $region9
  $region8: #{physics_loss_paper.1} parent=0 // pred_region
    _
  $region9: #{physics_loss_paper.1} parent=0 // pred_fallthru
    _
  // Predicated region
  $region10: #{physics_loss_paper.1} parent=0 // pred_check
    _
  $region11: #{physics_loss_paper.1} parent=0 // pred_check_branch
    %15 = sbr.rel (0) target = $region13
  $region12: #{physics_loss_paper.1} parent=0 // pred_region
    _
  $region13: #{physics_loss_paper.1} parent=0 // pred_fallthru
    _
  // Predicated region
  $region14: #{physics_loss_paper.1} parent=0 // pred_check
    _
  $region15: #{physics_loss_paper.1} parent=0 // pred_check_branch
    %17 = sbr.rel (0) target = $region17
  $region16: #{physics_loss_paper.1} parent=0 // pred_region
    _
  $region17: #{physics_loss_paper.1} parent=0 // pred_fallthru
    _
  // Predicated region
  $region18: #{physics_loss_paper.1} parent=0 // pred_check
    _
  $region19: #{physics_loss_paper.1} parent=0 // pred_check_branch
    %19 = sbr.rel (0) target = $region21
  $region20: #{physics_loss_paper.1} parent=0 // pred_region
    _
  $region21: #{physics_loss_paper.1} parent=0 // pred_fallthru
    _
  %v20 = vld [vmem:[%s0] ss:$2 sm:$0xf]
  %s21 = scalar_lea.vmem %s0, 1
  %v22 = vld [vmem:[%s21] ss:$2 sm:$0xf]
  %v23 = vld [vmem:[%s1] sm:$0xff]
  %v24 = vld [vmem:[%s1 + $0x8] sm:$0xff]
  %v25 = vld [vmem:[%s1 + $0x10] sm:$0xff]
  %v26 = vld [vmem:[%s1 + $0x18] sm:$0xff]
  %28 = vset.pattern.permute.xlu0 0
  %29 = vperm.xlu0 %28, %v23
  %v30 = vpop.permute.xlu0 %29
  %33 = vset.pattern.permute.xlu0 0
  %34 = vperm.xlu0 %33, %v24
  %v35 = vpop.permute.xlu0 %34
  %38 = vset.pattern.permute.xlu0 0
  %39 = vperm.xlu0 %38, %v25
  %v40 = vpop.permute.xlu0 %39
  %43 = vset.pattern.permute.xlu0 0
  %44 = vperm.xlu0 %43, %v26
  %v45 = vpop.permute.xlu0 %44
  %v48 = vperm.slane %v20, 0
  %v49 = vperm.slane %v20, 1
  %v50 = vperm.slane %v20, 2
  %v51 = vperm.slane %v20, 3
  %v56 = vmul.f32 %v30, %v48
  %v57 = vmul.f32 %v30, %v49
  %v58 = vmul.f32 %v30, %v50
  %v59 = vmul.f32 %v30, %v51
  %v60 = vmul.f32 %v35, %v48
  %v61 = vmul.f32 %v35, %v49
  %v62 = vmul.f32 %v35, %v50
  %v63 = vmul.f32 %v35, %v51
  %v64 = vmul.f32 %v40, %v48
  %v65 = vmul.f32 %v40, %v49
  %v66 = vmul.f32 %v40, %v50
  %v67 = vmul.f32 %v40, %v51
  %v68 = vmul.f32 %v45, %v48
  %v69 = vmul.f32 %v45, %v49
  %v70 = vmul.f32 %v45, %v50
  %v71 = vmul.f32 %v45, %v51
  %72 = vset.pattern.permute.xlu0 1
  %73 = vperm.xlu0 %72, %v23
  %v74 = vpop.permute.xlu0 %73
  %76 = vset.pattern.permute.xlu0 1
  %77 = vperm.xlu0 %76, %v24
  %v78 = vpop.permute.xlu0 %77
  %80 = vset.pattern.permute.xlu0 1
  %81 = vperm.xlu0 %80, %v25
  %v82 = vpop.permute.xlu0 %81
  %84 = vset.pattern.permute.xlu0 1
  %85 = vperm.xlu0 %84, %v26
  %v86 = vpop.permute.xlu0 %85
  %v89 = vperm.slane %v22, 0
  %v90 = vperm.slane %v22, 1
  %v91 = vperm.slane %v22, 2
  %v92 = vperm.slane %v22, 3
  %v97 = vmul.f32 %v74, %v89
  %v98 = vmul.f32 %v74, %v90
  %v99 = vmul.f32 %v74, %v91
  %v100 = vmul.f32 %v74, %v92
  %v101 = vmul.f32 %v78, %v89
  %v102 = vmul.f32 %v78, %v90
  %v103 = vmul.f32 %v78, %v91
  %v104 = vmul.f32 %v78, %v92
  %v105 = vmul.f32 %v82, %v89
  %v106 = vmul.f32 %v82, %v90
  %v107 = vmul.f32 %v82, %v91
  %v108 = vmul.f32 %v82, %v92
  %v109 = vmul.f32 %v86, %v89
  %v110 = vmul.f32 %v86, %v90
  %v111 = vmul.f32 %v86, %v91
  %v112 = vmul.f32 %v86, %v92
  %v113 = vadd.f32 %v56, %v97
  %v114 = vadd.f32 %v57, %v98
  %v115 = vadd.f32 %v58, %v99
  %v116 = vadd.f32 %v59, %v100
  %v117 = vadd.f32 %v60, %v101
  %v118 = vadd.f32 %v61, %v102
  %v119 = vadd.f32 %v62, %v103
  %v120 = vadd.f32 %v63, %v104
  %v121 = vadd.f32 %v64, %v105
  %v122 = vadd.f32 %v65, %v106
  %v123 = vadd.f32 %v66, %v107
  %v124 = vadd.f32 %v67, %v108
  %v125 = vadd.f32 %v68, %v109
  %v126 = vadd.f32 %v69, %v110
  %v127 = vadd.f32 %v70, %v111
  %v128 = vadd.f32 %v71, %v112
  %v129 = vld [vmem:[%s2] sm:$0xff]
  %v130 = vld [vmem:[%s2 + $0x8] sm:$0xff]
  %v131 = vld [vmem:[%s2 + $0x10] sm:$0xff]
  %v132 = vld [vmem:[%s2 + $0x18] sm:$0xff]
  %134 = vset.pattern.permute.xlu0 0
  %135 = vperm.xlu0 %134, %v129
  %v136 = vpop.permute.xlu0 %135
  %139 = vset.pattern.permute.xlu0 0
  %140 = vperm.xlu0 %139, %v130
  %v141 = vpop.permute.xlu0 %140
  %144 = vset.pattern.permute.xlu0 0
  %145 = vperm.xlu0 %144, %v131
  %v146 = vpop.permute.xlu0 %145
  %149 = vset.pattern.permute.xlu0 0
  %150 = vperm.xlu0 %149, %v132
  %v151 = vpop.permute.xlu0 %150
  %v153 = vadd.f32 %v113, %v136
  %v154 = vadd.f32 %v114, %v136
  %v155 = vadd.f32 %v115, %v136
  %v156 = vadd.f32 %v116, %v136
  %v157 = vadd.f32 %v117, %v141
  %v158 = vadd.f32 %v118, %v141
  %v159 = vadd.f32 %v119, %v141
  %v160 = vadd.f32 %v120, %v141
  %v161 = vadd.f32 %v121, %v146
  %v162 = vadd.f32 %v122, %v146
  %v163 = vadd.f32 %v123, %v146
  %v164 = vadd.f32 %v124, %v146
  %v165 = vadd.f32 %v125, %v151
  %v166 = vadd.f32 %v126, %v151
  %v167 = vadd.f32 %v127, %v151
  %v168 = vadd.f32 %v128, %v151
  %v169 = vtanh.pop %v153
  %v170 = vtanh.pop %v154
  %v171 = vtanh.pop %v155
  %v172 = vtanh.pop %v156
  %v173 = vtanh.pop %v157
  %v174 = vtanh.pop %v158
  %v175 = vtanh.pop %v159
  %v176 = vtanh.pop %v160
  %v177 = vtanh.pop %v161
  %v178 = vtanh.pop %v162
  %v179 = vtanh.pop %v163
  %v180 = vtanh.pop %v164
  %v181 = vtanh.pop %v165
  %v182 = vtanh.pop %v166
  %v183 = vtanh.pop %v167
  %v184 = vtanh.pop %v168
  %v185 = vld [vmem:[%s3] sm:$0xff]
  %v186 = vld [vmem:[%s4] sm:$0xff]
  %188 = vset.pattern.permute.xlu0 0
  %189 = vperm.xlu0 %188, %v186
  %v190 = vpop.permute.xlu0 %189
  %vm192 = vcmask 261120
  %v194 = vsel %vm192, %v185, 0
  %196 = vmatpush.msra.mxu0 0.0
  %197 = vmatpush.msra.mxu0 0.0
  %198 = vmatpush.msra.mxu0 0.0
  %199 = vmatpush.msra.mxu0 0.0
  %200 = vmatpush.msra.mxu0 0.0
  %201 = vmatpush.msra.mxu0 0.0
  %202 = vmatpush.msra.mxu0 0.0
  %203 = vmatpush.msra.mxu0 0.0
  %204 = vmatpush.msra.mxu0 0.0
  %205 = vmatpush.msra.mxu0 0.0
  %206 = vmatpush.msra.mxu0 0.0
  %207 = vmatpush.msra.mxu0 0.0
  %208 = vmatpush.msra.mxu0 %v181
  %209 = vmatpush.msra.mxu0 %v177
  %210 = vmatpush.msra.mxu0 %v173
  %211 = vmatpush.msra.mxu0 %v169
  %212 = vmatmul.f32.gmra.mxu0 %v194
  %v213 = vpop.f32.mrf.mxu0
  %v214 = vadd.f32 %v190, %v213
  %215 = vdwg.mxu0
  %216 = vmatpush.msra.mxu0 0.0
  %217 = vmatpush.msra.mxu0 0.0
  %218 = vmatpush.msra.mxu0 0.0
  %219 = vmatpush.msra.mxu0 0.0
  %220 = vmatpush.msra.mxu0 0.0
  %221 = vmatpush.msra.mxu0 0.0
  %222 = vmatpush.msra.mxu0 0.0
  %223 = vmatpush.msra.mxu0 0.0
  %224 = vmatpush.msra.mxu0 0.0
  %225 = vmatpush.msra.mxu0 0.0
  %226 = vmatpush.msra.mxu0 0.0
  %227 = vmatpush.msra.mxu0 0.0
  %228 = vmatpush.msra.mxu0 %v182
  %229 = vmatpush.msra.mxu0 %v178
  %230 = vmatpush.msra.mxu0 %v174
  %231 = vmatpush.msra.mxu0 %v170
  %232 = vmatmul.f32.gmra.mxu0 %v194
  %v233 = vpop.f32.mrf.mxu0
  %v234 = vadd.f32 %v190, %v233
  %235 = vdwg.mxu0
  %236 = vmatpush.msra.mxu0 0.0
  %237 = vmatpush.msra.mxu0 0.0
  %238 = vmatpush.msra.mxu0 0.0
  %239 = vmatpush.msra.mxu0 0.0
  %240 = vmatpush.msra.mxu0 0.0
  %241 = vmatpush.msra.mxu0 0.0
  %242 = vmatpush.msra.mxu0 0.0
  %243 = vmatpush.msra.mxu0 0.0
  %244 = vmatpush.msra.mxu0 0.0
  %245 = vmatpush.msra.mxu0 0.0
  %246 = vmatpush.msra.mxu0 0.0
  %247 = vmatpush.msra.mxu0 0.0
  %248 = vmatpush.msra.mxu0 %v183
  %249 = vmatpush.msra.mxu0 %v179
  %250 = vmatpush.msra.mxu0 %v175
  %251 = vmatpush.msra.mxu0 %v171
  %252 = vmatmul.f32.gmra.mxu0 %v194
  %v253 = vpop.f32.mrf.mxu0
  %v254 = vadd.f32 %v190, %v253
  %255 = vdwg.mxu0
  %256 = vmatpush.msra.mxu0 0.0
  %257 = vmatpush.msra.mxu0 0.0
  %258 = vmatpush.msra.mxu0 0.0
  %259 = vmatpush.msra.mxu0 0.0
  %260 = vmatpush.msra.mxu0 0.0
  %261 = vmatpush.msra.mxu0 0.0
  %262 = vmatpush.msra.mxu0 0.0
  %263 = vmatpush.msra.mxu0 0.0
  %264 = vmatpush.msra.mxu0 0.0
  %265 = vmatpush.msra.mxu0 0.0
  %266 = vmatpush.msra.mxu0 0.0
  %267 = vmatpush.msra.mxu0 0.0
  %268 = vmatpush.msra.mxu0 %v184
  %269 = vmatpush.msra.mxu0 %v180
  %270 = vmatpush.msra.mxu0 %v176
  %271 = vmatpush.msra.mxu0 %v172
  %272 = vmatmul.f32.gmra.mxu0 %v194
  %v273 = vpop.f32.mrf.mxu0
  %v274 = vadd.f32 %v190, %v273
  %275 = vdwg.mxu0
  %276 = vst [vmem:[%s5] sm:$0xff] %v214
  %277 = vst [vmem:[%s5 + $0x8] sm:$0xff] %v234
  %278 = vst [vmem:[%s5 + $0x10] sm:$0xff] %v254
  %279 = vst [vmem:[%s5 + $0x18] sm:$0xff] %v274
  // Predicated region
  $region22: #{physics_loss_paper.1} parent=0 // pred_check
    _
  $region23: #{physics_loss_paper.1} parent=0 // pred_check_branch
    %281 = sbr.rel (0) target = $region25
  $region24: #{physics_loss_paper.1} parent=0 // pred_region
    _
  $region25: #{physics_loss_paper.1} parent=0 // pred_fallthru
    _
  // Predicated region
  $region26: #{physics_loss_paper.1} parent=0 // pred_check
    _
  $region27: #{physics_loss_paper.1} parent=0 // pred_check_branch
    %283 = sbr.rel (0) target = $region29
  $region28: #{physics_loss_paper.1} parent=0 // pred_region
    _
  $region29: #{physics_loss_paper.1} parent=0 // pred_fallthru
    _

</llo_original>
